<compile_context>
chip_gen: v5e
topology: v5e:2x2
jax: 0.10.0
libtpu: 0.0.40
codegen_flags: <defaults>
</compile_context>

<pallas_src>
import jax
import jax.numpy as jnp
from jax.experimental import pallas as pl
from jax.experimental.pallas import tpu as pltpu

BN_EPS = 1e-5
MAX_TILE_S = 2048  # columns per spatial tile; sized for v7x's 64 MiB VMEM w/ double-buffering


def _pick_tile_s(S, max_tile=MAX_TILE_S):
    """Largest spatial tile that keeps the (8,128) BlockSpec rule valid."""
    if S <= max_tile:
        return S
    t = (max_tile // 128) * 128
    while t >= 128:
        if S % t == 0:
            return t
        t -= 128
    # No 128-multiple divisor: fall back to the full extent (always legal).
    return S


# ---------------------------------------------------------------------------
# Pass 1: per-channel input statistics, accumulated on the MXU.
#   xtx  <- sum over all tiles of  x @ x^T      (Cin, Cin)
#   sumx <- sum over all tiles of  sum(x, axis=spatial)   (Cin, 1)
# Outputs use a constant index_map -> stay resident in VMEM across the whole grid.
# ---------------------------------------------------------------------------
def _stats_kernel(x_ref, xtx_ref, sumx_ref):
    @pl.when((pl.program_id(0) == 0) & (pl.program_id(1) == 0))
    def _():
        xtx_ref[...] = jnp.zeros_like(xtx_ref)
        sumx_ref[...] = jnp.zeros_like(sumx_ref)

    x = x_ref[0]  # (Cin, TILE_S)
    # x @ x^T via dot_general (contract the spatial axis of both operands) -> MXU.
    xtx_ref[...] += jax.lax.dot_general(
        x, x,
        dimension_numbers=(((1,), (1,)), ((), ())),
        preferred_element_type=jnp.float32,
    )
    sumx_ref[...] += jnp.sum(x, axis=1, keepdims=True)


# ---------------------------------------------------------------------------
# Pass 2: y = W_folded @ x + bias  (conv + BN folded into the weights).
# Output block is (1, Cout, TILE_S): spatial axis on lanes -> dense stores.
# ---------------------------------------------------------------------------
def _conv_bn_kernel(x_ref, w_ref, b_ref, o_ref):
    x = x_ref[0]            # (Cin, TILE_S)
    w = w_ref[...]          # (Cout, Cin)   -- resident (constant index_map)
    b = b_ref[...]          # (Cout, 1)     -- resident
    y = jnp.dot(w, x, preferred_element_type=jnp.float32)   # (Cout, TILE_S)
    o_ref[0] = (y + b).astype(o_ref.dtype)


def downsample_conv(x, conv_weight, bn_gamma, bn_beta):
    """x: (N, Cin, H, W) f32; conv_weight: (Cout, Cin, 1, 1); bn_gamma/bn_beta: (Cout,).
    Returns (N, Cout, ceil(H/2), ceil(W/2)) — train-mode BN over the batch."""
    N, Cin, H, W = x.shape
    Cout = conv_weight.shape[0]

    # stride-2 subsample (kernel_size=1 only ever reads even pixels)
    xs = x[:, :, ::2, ::2]                                   # (N, Cin, H', W')
    Hp, Wp = xs.shape[2], xs.shape[3]
    S = Hp * Wp
    M = N * S

    # Channel-first flat slab: pure reshape, no transpose (NCHW-native).
    xf = xs.reshape(N, Cin, S).astype(jnp.float32)           # (N, Cin, S)

    tile_s = _pick_tile_s(S)
    n_s = S // tile_s
    grid = (N, n_s)

    # ---- Pass 1: global input statistics (accumulator pattern) ----
    xtx, sum_x = pl.pallas_call(
        _stats_kernel,
        out_shape=(
            jax.ShapeDtypeStruct((Cin, Cin), jnp.float32),
            jax.ShapeDtypeStruct((Cin, 1), jnp.float32),
        ),
        grid=grid,
        in_specs=[pl.BlockSpec((1, Cin, tile_s), lambda n, s: (n, 0, s))],
        out_specs=(
            pl.BlockSpec((Cin, Cin), lambda n, s: (0, 0)),
            pl.BlockSpec((Cin, 1), lambda n, s: (0, 0)),
        ),
        compiler_params=pltpu.CompilerParams(
            dimension_semantics=("arbitrary", "arbitrary")),
        cost_estimate=pl.CostEstimate(
            flops=2 * M * Cin * Cin,
            transcendentals=0,
            bytes_accessed=4 * (M * Cin + Cin * Cin + Cin)),
    )(xf)

    # ---- Fold BN into the conv weights (tiny (Cin,Cout)-sized math, plain JAX) ----
    w = conv_weight.reshape(Cout, Cin).astype(jnp.float32)
    m = jnp.float32(M)
    mean_x = sum_x[:, 0] / m                                  # (Cin,)
    exx = xtx / m                                             # E[x x^T], (Cin, Cin)
    cov_x = exx - jnp.outer(mean_x, mean_x)                   # (Cin, Cin)
    mean_y = w @ mean_x                                       # (Cout,)
    var_y = jnp.maximum(jnp.einsum("oi,ij,oj->o", w, cov_x, w), 0.0)  # (Cout,)
    inv_std = jax.lax.rsqrt(var_y + BN_EPS)
    scale = bn_gamma.astype(jnp.float32) * inv_std            # (Cout,)
    w_folded = w * scale[:, None]                             # (Cout, Cin)
    bias = (bn_beta.astype(jnp.float32) - scale * mean_y).reshape(Cout, 1)

    # ---- Pass 2: tiled matmul + bias, lane-dense NCHW output ----
    out_flat = pl.pallas_call(
        _conv_bn_kernel,
        out_shape=jax.ShapeDtypeStruct((N, Cout, S), jnp.float32),
        grid=grid,
        in_specs=[
            pl.BlockSpec((1, Cin, tile_s), lambda n, s: (n, 0, s)),
            pl.BlockSpec((Cout, Cin), lambda n, s: (0, 0)),
            pl.BlockSpec((Cout, 1), lambda n, s: (0, 0)),
        ],
        out_specs=pl.BlockSpec((1, Cout, tile_s), lambda n, s: (n, 0, s)),
        compiler_params=pltpu.CompilerParams(
            dimension_semantics=("parallel", "parallel")),
        cost_estimate=pl.CostEstimate(
            flops=2 * M * Cin * Cout,
            transcendentals=0,
            bytes_accessed=4 * (M * Cin + M * Cout + Cout * Cin + Cout)),
    )(xf, w_folded, bias)

    # Pure reshape back to NCHW — no transpose needed.
    return out_flat.reshape(N, Cout, Hp, Wp)


def _reference(x, conv_weight, bn_gamma, bn_beta):
    """Pure-JAX reference of the same forward (training-mode BN)."""
    xs = x[:, :, ::2, ::2]
    y = jnp.einsum("nchw,oc->nohw", xs, conv_weight.reshape(conv_weight.shape[0], -1))
    mean = jnp.mean(y, axis=(0, 2, 3), keepdims=True)
    var = jnp.mean((y - mean) ** 2, axis=(0, 2, 3), keepdims=True)
    y_hat = (y - mean) * jax.lax.rsqrt(var + BN_EPS)
    return y_hat * bn_gamma.reshape(1, -1, 1, 1) + bn_beta.reshape(1, -1, 1, 1)


if __name__ == "__main__":
    key = jax.random.PRNGKey(0)
    k_x, k_w = jax.random.split(key)

    N, inplanes, H, W = 2, 4, 16, 16
    planes = 8

    x = jax.random.normal(k_x, (N, inplanes, H, W), dtype=jnp.float32)
    # Conv2d(inplanes, planes, kernel_size=1, stride=2, bias=False) weight
    conv_weight = (jax.random.normal(k_w, (planes, inplanes, 1, 1), dtype=jnp.float32)
                   * (1.0 / jnp.sqrt(inplanes)))
    # BatchNorm2d(planes): weight=1, bias=0 (PyTorch default init)
    bn_gamma = jnp.ones((planes,), dtype=jnp.float32)
    bn_beta = jnp.zeros((planes,), dtype=jnp.float32)

    fn = jax.jit(downsample_conv)
    out = fn(x, conv_weight, bn_gamma, bn_beta)
    out = jax.block_until_ready(out)

    ref = _reference(x, conv_weight, bn_gamma, bn_beta)
    assert out.shape == (N, planes, H // 2, W // 2), out.shape
    assert jnp.allclose(out, ref, atol=1e-4, rtol=1e-4), float(jnp.max(jnp.abs(out - ref)))

    print("KERNEL_OK")
</pallas_src>

<mosaic_0001>
module attributes {stable_mosaic.version = 11 : i64} {
  func.func @_stats_kernel(%arg0: i32, %arg1: i32, %arg2: memref<1x4x64xf32, #tpu.memory_space<vmem>>, %arg3: memref<4x4xf32, #tpu.memory_space<vmem>>, %arg4: memref<4x1xf32, #tpu.memory_space<vmem>>) attributes {dimension_semantics = [#tpu.dimension_semantics<arbitrary>, #tpu.dimension_semantics<arbitrary>], iteration_bounds = array<i64: 2, 1>, scalar_prefetch = 0 : i64, scratch_operands = 0 : i64, tpu.core_type = #tpu.core_type<tc>, window_params = [{transform_indices = @transform_0, window_bounds = array<i64: 1, 4, 64>}, {pipeline_mode = #tpu.pipeline_mode<synchronous>, transform_indices = @transform_1, window_bounds = array<i64: 4, 4>}, {pipeline_mode = #tpu.pipeline_mode<synchronous>, transform_indices = @transform_2, window_bounds = array<i64: 4, 1>}]} {
    %c0_i32 = arith.constant 0 : i32
    %0 = arith.cmpi eq, %arg0, %c0_i32 : i32
    %c0_i32_0 = arith.constant 0 : i32
    %1 = arith.cmpi eq, %arg1, %c0_i32_0 : i32
    %2 = arith.andi %0, %1 : i1
    %3 = arith.extui %2 : i1 to i32
    %c0_i32_1 = arith.constant 0 : i32
    %4 = arith.cmpi ne, %3, %c0_i32_1 : i32
    scf.if %4 {
      %cst_13 = arith.constant 0.000000e+00 : f32
      %16 = vector.broadcast %cst_13 : f32 to vector<4x4xf32>
      %c0_14 = arith.constant 0 : index
      %c0_15 = arith.constant 0 : index
      %17 = vector.load %arg3[%c0_14, %c0_15] : memref<4x4xf32, #tpu.memory_space<vmem>>, vector<4x4xf32>
      tpu.vector_store %arg3[%c0_14, %c0_15], %16 {strides = array<i32>} : memref<4x4xf32, #tpu.memory_space<vmem>>, vector<4x4xf32>,
      %cst_16 = arith.constant 0.000000e+00 : f32
      %18 = vector.broadcast %cst_16 : f32 to vector<4x1xf32>
      %c0_17 = arith.constant 0 : index
      %c0_18 = arith.constant 0 : index
      %19 = vector.load %arg4[%c0_17, %c0_18] : memref<4x1xf32, #tpu.memory_space<vmem>>, vector<4x1xf32>
      tpu.vector_store %arg4[%c0_17, %c0_18], %18 {strides = array<i32>} : memref<4x1xf32, #tpu.memory_space<vmem>>, vector<4x1xf32>,
    } else {
    }
    %c0 = arith.constant 0 : index
    %c0_2 = arith.constant 0 : index
    %c0_3 = arith.constant 0 : index
    %5 = vector.load %arg2[%c0, %c0_2, %c0_3] : memref<1x4x64xf32, #tpu.memory_space<vmem>>, vector<1x4x64xf32>
    %6 = vector.shape_cast %5 : vector<1x4x64xf32> to vector<4x64xf32>
    %c0_4 = arith.constant 0 : index
    %c0_5 = arith.constant 0 : index
    %7 = vector.load %arg3[%c0_4, %c0_5] : memref<4x4xf32, #tpu.memory_space<vmem>>, vector<4x4xf32>
    %cst = arith.constant dense<0.000000e+00> : vector<4x4xf32>
    %8 = tpu.matmul %6, %6, %cst {dimension_numbers = #tpu.dot_dimension_numbers<[1], [1], [0], [0], [0, 0, 1, 0], [], []>} : vector<4x64xf32>, vector<4x64xf32>, vector<4x4xf32> -> vector<4x4xf32>
    %9 = arith.addf %7, %8 : vector<4x4xf32>
    %c0_6 = arith.constant 0 : index
    %c0_7 = arith.constant 0 : index
    %10 = vector.load %arg3[%c0_6, %c0_7] : memref<4x4xf32, #tpu.memory_space<vmem>>, vector<4x4xf32>
    tpu.vector_store %arg3[%c0_6, %c0_7], %9 {strides = array<i32>} : memref<4x4xf32, #tpu.memory_space<vmem>>, vector<4x4xf32>,
    %c0_8 = arith.constant 0 : index
    %c0_9 = arith.constant 0 : index
    %11 = vector.load %arg4[%c0_8, %c0_9] : memref<4x1xf32, #tpu.memory_space<vmem>>, vector<4x1xf32>
    %cst_10 = arith.constant dense<0.000000e+00> : vector<4xf32>
    %12 = vector.multi_reduction <add>, %6, %cst_10 [1] : vector<4x64xf32> to vector<4xf32>
    %13 = vector.shape_cast %12 : vector<4xf32> to vector<4x1xf32>
    %14 = arith.addf %11, %13 : vector<4x1xf32>
    %c0_11 = arith.constant 0 : index
    %c0_12 = arith.constant 0 : index
    %15 = vector.load %arg4[%c0_11, %c0_12] : memref<4x1xf32, #tpu.memory_space<vmem>>, vector<4x1xf32>
    tpu.vector_store %arg4[%c0_11, %c0_12], %14 {strides = array<i32>} : memref<4x1xf32, #tpu.memory_space<vmem>>, vector<4x1xf32>,
    return
  }
  func.func @transform_0(%arg0: i32, %arg1: i32) -> (i32, i32, i32) {
    %c0_i32 = arith.constant 0 : i32
    %c0_i32_0 = arith.constant 0 : i32
    return %arg0, %c0_i32, %arg1 : i32, i32, i32
  }
  func.func @transform_1(%arg0: i32, %arg1: i32) -> (i32, i32) {
    %c0_i32 = arith.constant 0 : i32
    %c0_i32_0 = arith.constant 0 : i32
    %c0_i32_1 = arith.constant 0 : i32
    return %c0_i32, %c0_i32_0 : i32, i32
  }
  func.func @transform_2(%arg0: i32, %arg1: i32) -> (i32, i32) {
    %c0_i32 = arith.constant 0 : i32
    %c0_i32_0 = arith.constant 0 : i32
    %c0_i32_1 = arith.constant 0 : i32
    return %c0_i32, %c0_i32_0 : i32, i32
  }
}

module attributes {stable_mosaic.version = 11 : i64} {
  func.func @_conv_bn_kernel(%arg0: i32, %arg1: i32, %arg2: memref<1x4x64xf32, #tpu.memory_space<vmem>>, %arg3: memref<8x4xf32, #tpu.memory_space<vmem>>, %arg4: memref<8x1xf32, #tpu.memory_space<vmem>>, %arg5: memref<1x8x64xf32, #tpu.memory_space<vmem>>) attributes {dimension_semantics = [#tpu.dimension_semantics<parallel>, #tpu.dimension_semantics<parallel>], iteration_bounds = array<i64: 2, 1>, scalar_prefetch = 0 : i64, scratch_operands = 0 : i64, tpu.core_type = #tpu.core_type<tc>, window_params = [{transform_indices = @transform_0, window_bounds = array<i64: 1, 4, 64>}, {pipeline_mode = #tpu.pipeline_mode<synchronous>, transform_indices = @transform_1, window_bounds = array<i64: 8, 4>}, {pipeline_mode = #tpu.pipeline_mode<synchronous>, transform_indices = @transform_2, window_bounds = array<i64: 8, 1>}, {transform_indices = @transform_3, window_bounds = array<i64: 1, 8, 64>}]} {
    %c0 = arith.constant 0 : index
    %c0_0 = arith.constant 0 : index
    %c0_1 = arith.constant 0 : index
    %0 = vector.load %arg2[%c0, %c0_0, %c0_1] : memref<1x4x64xf32, #tpu.memory_space<vmem>>, vector<1x4x64xf32>
    %1 = vector.shape_cast %0 : vector<1x4x64xf32> to vector<4x64xf32>
    %c0_2 = arith.constant 0 : index
    %c0_3 = arith.constant 0 : index
    %2 = vector.load %arg3[%c0_2, %c0_3] : memref<8x4xf32, #tpu.memory_space<vmem>>, vector<8x4xf32>
    %c0_4 = arith.constant 0 : index
    %c0_5 = arith.constant 0 : index
    %3 = vector.load %arg4[%c0_4, %c0_5] : memref<8x1xf32, #tpu.memory_space<vmem>>, vector<8x1xf32>
    %cst = arith.constant dense<0.000000e+00> : vector<8x64xf32>
    %4 = tpu.matmul %2, %1, %cst {dimension_numbers = #tpu.dot_dimension_numbers<[1], [0], [0], [1], [0, 0, 1, 1], [], []>} : vector<8x4xf32>, vector<4x64xf32>, vector<8x64xf32> -> vector<8x64xf32>
    %5 = vector.broadcast %3 : vector<8x1xf32> to vector<8x64xf32>
    %6 = arith.addf %4, %5 : vector<8x64xf32>
    %c0_6 = arith.constant 0 : index
    %c0_7 = arith.constant 0 : index
    %c0_8 = arith.constant 0 : index
    %7 = vector.load %arg5[%c0_6, %c0_7, %c0_8] : memref<1x8x64xf32, #tpu.memory_space<vmem>>, vector<1x8x64xf32>
    %8 = vector.shape_cast %7 : vector<1x8x64xf32> to vector<8x64xf32>
    %9 = vector.shape_cast %6 : vector<8x64xf32> to vector<1x8x64xf32>
    tpu.vector_store %arg5[%c0_6, %c0_7, %c0_8], %9 {strides = array<i32>} : memref<1x8x64xf32, #tpu.memory_space<vmem>>, vector<1x8x64xf32>,
    return
  }
  func.func @transform_0(%arg0: i32, %arg1: i32) -> (i32, i32, i32) {
    %c0_i32 = arith.constant 0 : i32
    %c0_i32_0 = arith.constant 0 : i32
    return %arg0, %c0_i32, %arg1 : i32, i32, i32
  }
  func.func @transform_1(%arg0: i32, %arg1: i32) -> (i32, i32) {
    %c0_i32 = arith.constant 0 : i32
    %c0_i32_0 = arith.constant 0 : i32
    %c0_i32_1 = arith.constant 0 : i32
    return %c0_i32, %c0_i32_0 : i32, i32
  }
  func.func @transform_2(%arg0: i32, %arg1: i32) -> (i32, i32) {
    %c0_i32 = arith.constant 0 : i32
    %c0_i32_0 = arith.constant 0 : i32
    %c0_i32_1 = arith.constant 0 : i32
    return %c0_i32, %c0_i32_0 : i32, i32
  }
  func.func @transform_3(%arg0: i32, %arg1: i32) -> (i32, i32, i32) {
    %c0_i32 = arith.constant 0 : i32
    %c0_i32_0 = arith.constant 0 : i32
    return %arg0, %c0_i32, %arg1 : i32, i32, i32
  }
}

</mosaic_0001>

<llo_original>
// kernel: downsample_conv.2
$region0: #{downsample_conv.2}
  #allocation0 [shape = 'u32[]', space=smem, size = 0x4, offset = 0x4, fixed_abs, tag = 'smem constant byte address 0x4 - core index']
  #allocation1 [shape = 'u32[72,128]{1,0:T(1,128)}', space=vmem, size = 0x9000, scoped, tag = 'internal scratch']
  %s0 = inlined_call_operand.vmem [shape: f32[2,4,64], index: 0, kind: input, shape index: {}]
  %s1 = inlined_call_operand.vmem [shape: f32[4,4], index: 1, kind: output, shape index: {0}]
  %s2 = inlined_call_operand.vmem [shape: f32[4,1], index: 2, kind: output, shape index: {1}]
  %3 = xla_tuple %s1, %s2
  %s4 = sld [smem:[#allocation0]]
  $region49: #{downsample_conv.2} parent=0
    _
  %s6 = ssub.s32 1, %s4
  %s7 = scalar_select 0, %s6, %s4
  loop: start=0, step=1, limit=4
  $region2: #{downsample_conv.2} parent=0 // loop_pre_header
    _
  $region3: #{downsample_conv.2} parent=0 // loop_header
    %s9 = sphi 0, %s13
    %p10 = scmp.ge.s32.totalorder %s9, 4
    %s16 = sphi 0, %s28
    %s17 = sphi 0, %s24
    %s18 = sphi 0, %s16
    %s19 = sphi 0, %s17
    %s20 = sphi 0, %s18
    %s21 = sphi 0, %s19
    %s33 = sphi 0, %s35
    %s36 = sphi 0, %s33
    %s37 = sphi 0, %s36
    %s53 = sphi 0, %s37
    %s57 = sphi 0, %s57
    %s59 = sphi 0, %s57
    %s60 = sphi 0, %s59
    %s74 = sphi 0, %s60
    %s78 = sphi 0, %s78
    %s80 = sphi 0, %s78
    %s81 = sphi 0, %s80
    %s95 = sphi 0, %s81
  $region4: #{downsample_conv.2} parent=0 // loop_header_branch
    %12 = sbr.rel (%p10) target = $region8
  $region5: #{downsample_conv.2} parent=0 // loop_body
    %s14 = ssub.s32 %s9, 1
    %s15 = ssub.s32 %s9, 2
    %s22 = sadd.s32 1, %s17
    %p23 = scmp.ge.s32.totalorder %s22, 1
    %s24 = scalar_select %p23, 0, %s22
    %s25 = sadd.s32 1, %s16
    %s26 = scalar_select %p23, %s25, %s16
    %p27 = scmp.ge.s32.totalorder %s26, 2
    %s28 = scalar_select %p27, 0, %s26
    %s29 = ssub.s32 %s16, %s28
    %s30 = ssub.s32 %s17, %s24
    %s31 = sor.u32 %s29, %s30
    %p32 = scmp.eq.s32.totalorder %s31, 0
    %s34 = sadd.s32 %s33, 1
    %s35 = scalar_select %p32, %s33, %s34
    %p38 = pneg %p32
    %p39 = scmp.eq.s32.totalorder %s9, 1
    %p40 = por %p38, %p39
    %p41 = scmp.ne.s32.totalorder %s33, %s36
    %p42 = scmp.eq.s32.totalorder %s9, 0
    %p43 = por %p41, %p42
    %p44 = scmp.ne.s32.totalorder %s33, %s36
    %p45 = scmp.eq.s32.totalorder %s14, 1
    %p46 = por %p44, %p45
    %p47 = scmp.ne.s32.totalorder %s36, %s37
    %p48 = scmp.eq.s32.totalorder %s14, 0
    %p49 = por %p47, %p48
    %p50 = scmp.ne.s32.totalorder %s36, %s37
    %p51 = scmp.eq.s32.totalorder %s15, 1
    %p52 = por %p50, %p51
    %p54 = scmp.ne.s32.totalorder %s37, %s53
    %p55 = scmp.eq.s32.totalorder %s15, 0
    %p56 = por %p54, %p55
    %s58 = sadd.s32 %s57, 1
    %p61 = scmp.eq.s32.totalorder %s9, 1
    %p62 = scmp.ne.s32.totalorder %s57, %s59
    %p63 = scmp.eq.s32.totalorder %s9, 0
    %p64 = por %p62, %p63
    %p65 = scmp.ne.s32.totalorder %s57, %s59
    %p66 = scmp.eq.s32.totalorder %s14, 1
    %p67 = por %p65, %p66
    %p68 = scmp.ne.s32.totalorder %s59, %s60
    %p69 = scmp.eq.s32.totalorder %s14, 0
    %p70 = por %p68, %p69
    %p71 = scmp.ne.s32.totalorder %s59, %s60
    %p72 = scmp.eq.s32.totalorder %s15, 1
    %p73 = por %p71, %p72
    %p75 = scmp.ne.s32.totalorder %s60, %s74
    %p76 = scmp.eq.s32.totalorder %s15, 0
    %p77 = por %p75, %p76
    %s79 = sadd.s32 %s78, 1
    %p82 = scmp.eq.s32.totalorder %s9, 1
    %p83 = scmp.ne.s32.totalorder %s78, %s80
    %p84 = scmp.eq.s32.totalorder %s9, 0
    %p85 = por %p83, %p84
    %p86 = scmp.ne.s32.totalorder %s78, %s80
    %p87 = scmp.eq.s32.totalorder %s14, 1
    %p88 = por %p86, %p87
    %p89 = scmp.ne.s32.totalorder %s80, %s81
    %p90 = scmp.eq.s32.totalorder %s14, 0
    %p91 = por %p89, %p90
    %p92 = scmp.ne.s32.totalorder %s80, %s81
    %p93 = scmp.eq.s32.totalorder %s15, 1
    %p94 = por %p92, %p93
    %p96 = scmp.ne.s32.totalorder %s81, %s95
    %p97 = scmp.eq.s32.totalorder %s15, 0
    %p98 = por %p96, %p97
    %p99 = scmp.le.s32.totalorder 1, %s9
    %p100 = scmp.lt.s32.totalorder %s9, 3
    %p101 = pnand %p99, %p100
    %p102 = pneg %p101
    // Predicated region
    $region9: #{downsample_conv.2} parent=5 // pred_check
      _
    $region10: #{downsample_conv.2} parent=5 // pred_check_branch
      %104 = sbr.rel (%p101) target = $region12
    $region11: #{downsample_conv.2} parent=5 // pred_region
      %s105 = ssub.s32 %s9, 1
    $region12: #{downsample_conv.2} parent=5 // pred_fallthru
      _
    %p106 = scmp.lt.s32.totalorder %s9, 2
    // Predicated region
    $region13: #{downsample_conv.2} parent=5 // pred_check
      %p107 = pneg %p106
    $region14: #{downsample_conv.2} parent=5 // pred_check_branch
      %109 = sbr.rel (%p107) target = $region16
    $region15: #{downsample_conv.2} parent=5 // pred_region
      // Predicated region
      $region17: #{downsample_conv.2} parent=15 // pred_check
        %p110 = pneg %p43
      $region18: #{downsample_conv.2} parent=15 // pred_check_branch
        %112 = sbr.rel (%p110) target = $region20
      $region19: #{downsample_conv.2} parent=15 // pred_region
        %p113 = scmp.lt.s32.totalorder %s16, 1
        %s114 = scalar_select %p113, %s16, 1
        %p115 = scmp.lt.s32.totalorder %s17, 0
        %s116 = scalar_select %p115, %s17, 0
        %s117 = sadd.s32 %s116, %s114
        %s118 = smul.addr %s117, 4
        %s119 = scalar_lea.vmem %s0, %s118
      $region20: #{downsample_conv.2} parent=15 // pred_fallthru
        _
    $region16: #{downsample_conv.2} parent=5 // pred_fallthru
      _
    %p120 = scmp.le.s32.totalorder 1, %s9
    %p121 = scmp.lt.s32.totalorder %s9, 3
    %p122 = pnand %p120, %p121
    %p123 = pneg %p122
    // Predicated region
    $region21: #{downsample_conv.2} parent=5 // pred_check
      _
    $region22: #{downsample_conv.2} parent=5 // pred_check_branch
      %125 = sbr.rel (%p122) target = $region24
    $region23: #{downsample_conv.2} parent=5 // pred_region
      %s126 = ssub.s32 %s9, 1
      %p127 = scmp.lt.s32.totalorder %s18, 1
      %s128 = scalar_select %p127, %s18, 1
      %p129 = scmp.lt.s32.totalorder %s19, 0
      %s130 = scalar_select %p129, %s19, 0
      %s131 = sadd.s32 %s130, %s128
      %s132 = smul.addr %s131, 4
      %s133 = scalar_lea.vmem %s0, %s132
      %p134 = pneg %p49
      %p135 = pneg %p46
      %p136 = pneg %p70
      %p137 = pneg %p67
      %p138 = pneg %p91
      %p139 = pneg %p88
      %p140 = scmp.lt.s32.totalorder %s18, 1
      %s141 = scalar_select %p140, %s18, 1
      %p142 = scmp.lt.s32.totalorder %s19, 0
      %s143 = scalar_select %p142, %s19, 0
      %s144 = sadd.s32 %s143, %s141
      %s145 = smul.addr %s144, 4
      %s146 = scalar_lea.vmem %s0, %s145
      %p147 = scmp.eq.s32.totalorder %s18, 0
      %p148 = scmp.eq.s32.totalorder %s19, 0
      %p149 = pnand %p147, %p148
      %p150 = pneg %p149
      // Predicated region
      $region25: #{downsample_conv.2} parent=23 // pred_check
        _
      $region26: #{downsample_conv.2} parent=23 // pred_check_branch
        %152 = sbr.rel (%p149) target = $region28
      $region27: #{downsample_conv.2} parent=23 // pred_region
        %vm153 = vcmask 27648
        %154 = vst.msk [vmem:[%s1] sm:$0xf] %vm153, 0.0
        %vm155 = vcmask 3072
        %156 = vst.msk [vmem:[%s2] sm:$0xf] %vm155, 0.0
      $region28: #{downsample_conv.2} parent=23 // pred_fallthru
        _
      %v157 = vld [vmem:[%s146] sm:$0xf]
      %v158 = vld [vmem:[%s1] sm:$0xf]
      %vm159 = vcmask 523264
      %v161 = vsel %vm159, %v157, 0
      %163 = vmatpush.xpose.msra.mxu0 0.0
      %164 = vmatpush.xpose.msra.mxu0 0.0
      %165 = vmatpush.xpose.msra.mxu0 0.0
      %166 = vmatpush.xpose.msra.mxu0 0.0
      %167 = vmatpush.xpose.msra.mxu0 0.0
      %168 = vmatpush.xpose.msra.mxu0 0.0
      %169 = vmatpush.xpose.msra.mxu0 0.0
      %170 = vmatpush.xpose.msra.mxu0 0.0
      %171 = vmatpush.xpose.msra.mxu0 0.0
      %172 = vmatpush.xpose.msra.mxu0 0.0
      %173 = vmatpush.xpose.msra.mxu0 0.0
      %174 = vmatpush.xpose.msra.mxu0 0.0
      %175 = vmatpush.xpose.msra.mxu0 0.0
      %176 = vmatpush.xpose.msra.mxu0 0.0
      %177 = vmatpush.xpose.msra.mxu0 0.0
      %178 = vmatpush.xpose.msra.mxu0 %v161
      %179 = vmatmul.f32.gmra.mxu0 %v161
      %v180 = vpop.f32.mrf.mxu0
      %v181 = vadd.f32 0.0, %v180
      %182 = vdwg.mxu0
      %v183 = vadd.f32 %v158, %v181
      %vm184 = vcmask 27648
      %185 = vst.msk [vmem:[%s1] sm:$0xf] %vm184, %v183
      %v186 = vld [vmem:[%s2] sm:$0xf]
      %vm187 = vcmask 519168
      %v188 = vsel %vm187, %v157, 0.0
      %189 = vadd.xlane.f32.xlu0 %v188
      %v190 = vpop.xlane.xlu0 %189
      %v191 = vadd.f32 %v186, %v190
      %vm192 = vcmask 3072
      %193 = vst.msk [vmem:[%s2] sm:$0xf] %vm192, %v191
      // Predicated region
      $region29: #{downsample_conv.2} parent=23 // pred_check
        %p194 = pneg %p67
      $region30: #{downsample_conv.2} parent=23 // pred_check_branch
        %196 = sbr.rel (%p194) target = $region32
      $region31: #{downsample_conv.2} parent=23 // pred_region
        _
      $region32: #{downsample_conv.2} parent=23 // pred_fallthru
        _
      // Predicated region
      $region33: #{downsample_conv.2} parent=23 // pred_check
        %p197 = pneg %p88
      $region34: #{downsample_conv.2} parent=23 // pred_check_branch
        %199 = sbr.rel (%p197) target = $region36
      $region35: #{downsample_conv.2} parent=23 // pred_region
        _
      $region36: #{downsample_conv.2} parent=23 // pred_fallthru
        _
      // Predicated region
      $region37: #{downsample_conv.2} parent=23 // pred_check
        %p200 = pneg %p67
      $region38: #{downsample_conv.2} parent=23 // pred_check_branch
        %202 = sbr.rel (%p200) target = $region40
      $region39: #{downsample_conv.2} parent=23 // pred_region
        _
      $region40: #{downsample_conv.2} parent=23 // pred_fallthru
        _
      // Predicated region
      $region41: #{downsample_conv.2} parent=23 // pred_check
        %p203 = pneg %p88
      $region42: #{downsample_conv.2} parent=23 // pred_check_branch
        %205 = sbr.rel (%p203) target = $region44
      $region43: #{downsample_conv.2} parent=23 // pred_region
        _
      $region44: #{downsample_conv.2} parent=23 // pred_fallthru
        _
    $region24: #{downsample_conv.2} parent=5 // pred_fallthru
      _
    %p206 = scmp.le.s32.totalorder 2, %s9
    // Predicated region
    $region45: #{downsample_conv.2} parent=5 // pred_check
      %p207 = pneg %p206
    $region46: #{downsample_conv.2} parent=5 // pred_check_branch
      %209 = sbr.rel (%p207) target = $region48
    $region47: #{downsample_conv.2} parent=5 // pred_region
      %s210 = ssub.s32 %s9, 2
    $region48: #{downsample_conv.2} parent=5 // pred_fallthru
      _
  $region6: #{downsample_conv.2} parent=0 // loop_footer
    %s13 = sadd.s32 1, %s9
  $region7: #{downsample_conv.2} parent=0 // loop_footer_branch
    %8 = sbr.rel target = $region3
  $region8: #{downsample_conv.2} parent=0 // loop_exit
    _

// kernel: downsample_conv.3
$region0: #{downsample_conv.3}
  #allocation0 [shape = 'u32[]', space=smem, size = 0x4, offset = 0x4, fixed_abs, tag = 'smem constant byte address 0x4 - core index']
  #allocation1 [shape = 'u32[72,128]{1,0:T(1,128)}', space=vmem, size = 0x9000, scoped, tag = 'internal scratch']
  %s0 = inlined_call_operand.vmem [shape: f32[2,4,64], index: 0, kind: input, shape index: {}]
  %s1 = inlined_call_operand.vmem [shape: f32[8,4], index: 1, kind: input, shape index: {}]
  %s2 = inlined_call_operand.vmem [shape: f32[8,1], index: 2, kind: input, shape index: {}]
  %s3 = inlined_call_operand.vmem [shape: f32[2,8,64], index: 3, kind: output, shape index: {}]
  %s4 = sld [smem:[#allocation0]]
  $region45: #{downsample_conv.3} parent=0
    _
  %s6 = ssub.s32 1, %s4
  %s7 = scalar_select 0, %s6, %s4
  loop: start=0, step=1, limit=4
  $region2: #{downsample_conv.3} parent=0 // loop_pre_header
    _
  $region3: #{downsample_conv.3} parent=0 // loop_header
    %s9 = sphi 0, %s13
    %p10 = scmp.ge.s32.totalorder %s9, 4
    %s16 = sphi 0, %s28
    %s17 = sphi 0, %s24
    %s18 = sphi 0, %s16
    %s19 = sphi 0, %s17
    %s20 = sphi 0, %s18
    %s21 = sphi 0, %s19
    %s33 = sphi 0, %s35
    %s36 = sphi 0, %s33
    %s37 = sphi 0, %s36
    %s53 = sphi 0, %s37
    %s57 = sphi 0, %s57
    %s59 = sphi 0, %s57
    %s60 = sphi 0, %s59
    %s74 = sphi 0, %s60
    %s78 = sphi 0, %s78
    %s80 = sphi 0, %s78
    %s81 = sphi 0, %s80
    %s95 = sphi 0, %s81
    %s103 = sphi 0, %s105
    %s106 = sphi 0, %s103
    %s107 = sphi 0, %s106
    %s123 = sphi 0, %s107
  $region4: #{downsample_conv.3} parent=0 // loop_header_branch
    %12 = sbr.rel (%p10) target = $region8
  $region5: #{downsample_conv.3} parent=0 // loop_body
    %s14 = ssub.s32 %s9, 1
    %s15 = ssub.s32 %s9, 2
    %s22 = sadd.s32 1, %s17
    %p23 = scmp.ge.s32.totalorder %s22, 1
    %s24 = scalar_select %p23, 0, %s22
    %s25 = sadd.s32 1, %s16
    %s26 = scalar_select %p23, %s25, %s16
    %p27 = scmp.ge.s32.totalorder %s26, 2
    %s28 = scalar_select %p27, 0, %s26
    %s29 = ssub.s32 %s16, %s28
    %s30 = ssub.s32 %s17, %s24
    %s31 = sor.u32 %s29, %s30
    %p32 = scmp.eq.s32.totalorder %s31, 0
    %s34 = sadd.s32 %s33, 1
    %s35 = scalar_select %p32, %s33, %s34
    %p38 = pneg %p32
    %p39 = scmp.eq.s32.totalorder %s9, 1
    %p40 = por %p38, %p39
    %p41 = scmp.ne.s32.totalorder %s33, %s36
    %p42 = scmp.eq.s32.totalorder %s9, 0
    %p43 = por %p41, %p42
    %p44 = scmp.ne.s32.totalorder %s33, %s36
    %p45 = scmp.eq.s32.totalorder %s14, 1
    %p46 = por %p44, %p45
    %p47 = scmp.ne.s32.totalorder %s36, %s37
    %p48 = scmp.eq.s32.totalorder %s14, 0
    %p49 = por %p47, %p48
    %p50 = scmp.ne.s32.totalorder %s36, %s37
    %p51 = scmp.eq.s32.totalorder %s15, 1
    %p52 = por %p50, %p51
    %p54 = scmp.ne.s32.totalorder %s37, %s53
    %p55 = scmp.eq.s32.totalorder %s15, 0
    %p56 = por %p54, %p55
    %s58 = sadd.s32 %s57, 1
    %p61 = scmp.eq.s32.totalorder %s9, 1
    %p62 = scmp.ne.s32.totalorder %s57, %s59
    %p63 = scmp.eq.s32.totalorder %s9, 0
    %p64 = por %p62, %p63
    %p65 = scmp.ne.s32.totalorder %s57, %s59
    %p66 = scmp.eq.s32.totalorder %s14, 1
    %p67 = por %p65, %p66
    %p68 = scmp.ne.s32.totalorder %s59, %s60
    %p69 = scmp.eq.s32.totalorder %s14, 0
    %p70 = por %p68, %p69
    %p71 = scmp.ne.s32.totalorder %s59, %s60
    %p72 = scmp.eq.s32.totalorder %s15, 1
    %p73 = por %p71, %p72
    %p75 = scmp.ne.s32.totalorder %s60, %s74
    %p76 = scmp.eq.s32.totalorder %s15, 0
    %p77 = por %p75, %p76
    %s79 = sadd.s32 %s78, 1
    %p82 = scmp.eq.s32.totalorder %s9, 1
    %p83 = scmp.ne.s32.totalorder %s78, %s80
    %p84 = scmp.eq.s32.totalorder %s9, 0
    %p85 = por %p83, %p84
    %p86 = scmp.ne.s32.totalorder %s78, %s80
    %p87 = scmp.eq.s32.totalorder %s14, 1
    %p88 = por %p86, %p87
    %p89 = scmp.ne.s32.totalorder %s80, %s81
    %p90 = scmp.eq.s32.totalorder %s14, 0
    %p91 = por %p89, %p90
    %p92 = scmp.ne.s32.totalorder %s80, %s81
    %p93 = scmp.eq.s32.totalorder %s15, 1
    %p94 = por %p92, %p93
    %p96 = scmp.ne.s32.totalorder %s81, %s95
    %p97 = scmp.eq.s32.totalorder %s15, 0
    %p98 = por %p96, %p97
    %s99 = ssub.s32 %s16, %s28
    %s100 = ssub.s32 %s17, %s24
    %s101 = sor.u32 %s99, %s100
    %p102 = scmp.eq.s32.totalorder %s101, 0
    %s104 = sadd.s32 %s103, 1
    %s105 = scalar_select %p102, %s103, %s104
    %p108 = pneg %p102
    %p109 = scmp.eq.s32.totalorder %s9, 1
    %p110 = por %p108, %p109
    %p111 = scmp.ne.s32.totalorder %s103, %s106
    %p112 = scmp.eq.s32.totalorder %s9, 0
    %p113 = por %p111, %p112
    %p114 = scmp.ne.s32.totalorder %s103, %s106
    %p115 = scmp.eq.s32.totalorder %s14, 1
    %p116 = por %p114, %p115
    %p117 = scmp.ne.s32.totalorder %s106, %s107
    %p118 = scmp.eq.s32.totalorder %s14, 0
    %p119 = por %p117, %p118
    %p120 = scmp.ne.s32.totalorder %s106, %s107
    %p121 = scmp.eq.s32.totalorder %s15, 1
    %p122 = por %p120, %p121
    %p124 = scmp.ne.s32.totalorder %s107, %s123
    %p125 = scmp.eq.s32.totalorder %s15, 0
    %p126 = por %p124, %p125
    %p127 = scmp.le.s32.totalorder 1, %s9
    %p128 = scmp.lt.s32.totalorder %s9, 3
    %p129 = pnand %p127, %p128
    %p130 = pneg %p129
    // Predicated region
    $region9: #{downsample_conv.3} parent=5 // pred_check
      _
    $region10: #{downsample_conv.3} parent=5 // pred_check_branch
      %132 = sbr.rel (%p129) target = $region12
    $region11: #{downsample_conv.3} parent=5 // pred_region
      %s133 = ssub.s32 %s9, 1
      // Predicated region
      $region13: #{downsample_conv.3} parent=11 // pred_check
        %p134 = pneg %p70
      $region14: #{downsample_conv.3} parent=11 // pred_check_branch
        %136 = sbr.rel (%p134) target = $region16
      $region15: #{downsample_conv.3} parent=11 // pred_region
        _
      $region16: #{downsample_conv.3} parent=11 // pred_fallthru
        _
      // Predicated region
      $region17: #{downsample_conv.3} parent=11 // pred_check
        %p137 = pneg %p91
      $region18: #{downsample_conv.3} parent=11 // pred_check_branch
        %139 = sbr.rel (%p137) target = $region20
      $region19: #{downsample_conv.3} parent=11 // pred_region
        _
      $region20: #{downsample_conv.3} parent=11 // pred_fallthru
        _
    $region12: #{downsample_conv.3} parent=5 // pred_fallthru
      _
    %p140 = scmp.lt.s32.totalorder %s9, 2
    // Predicated region
    $region21: #{downsample_conv.3} parent=5 // pred_check
      %p141 = pneg %p140
    $region22: #{downsample_conv.3} parent=5 // pred_check_branch
      %143 = sbr.rel (%p141) target = $region24
    $region23: #{downsample_conv.3} parent=5 // pred_region
      // Predicated region
      $region25: #{downsample_conv.3} parent=23 // pred_check
        %p144 = pneg %p43
      $region26: #{downsample_conv.3} parent=23 // pred_check_branch
        %146 = sbr.rel (%p144) target = $region28
      $region27: #{downsample_conv.3} parent=23 // pred_region
        %p147 = scmp.lt.s32.totalorder %s16, 1
        %s148 = scalar_select %p147, %s16, 1
        %p149 = scmp.lt.s32.totalorder %s17, 0
        %s150 = scalar_select %p149, %s17, 0
        %s151 = sadd.s32 %s150, %s148
        %s152 = smul.addr %s151, 4
        %s153 = scalar_lea.vmem %s0, %s152
      $region28: #{downsample_conv.3} parent=23 // pred_fallthru
        _
    $region24: #{downsample_conv.3} parent=5 // pred_fallthru
      _
    %p154 = scmp.le.s32.totalorder 1, %s9
    %p155 = scmp.lt.s32.totalorder %s9, 3
    %p156 = pnand %p154, %p155
    %p157 = pneg %p156
    // Predicated region
    $region29: #{downsample_conv.3} parent=5 // pred_check
      _
    $region30: #{downsample_conv.3} parent=5 // pred_check_branch
      %159 = sbr.rel (%p156) target = $region32
    $region31: #{downsample_conv.3} parent=5 // pred_region
      %s160 = ssub.s32 %s9, 1
      %p161 = scmp.lt.s32.totalorder %s18, 1
      %s162 = scalar_select %p161, %s18, 1
      %p163 = scmp.lt.s32.totalorder %s19, 0
      %s164 = scalar_select %p163, %s19, 0
      %s165 = sadd.s32 %s164, %s162
      %s166 = smul.addr %s165, 4
      %s167 = scalar_lea.vmem %s0, %s166
      %p168 = pneg %p49
      %p169 = pneg %p46
      %p170 = pneg %p70
      %p171 = pneg %p67
      %p172 = pneg %p91
      %p173 = pneg %p88
      %p174 = pneg %p119
      %p175 = pneg %p116
      %p176 = scmp.lt.s32.totalorder %s18, 1
      %s177 = scalar_select %p176, %s18, 1
      %p178 = scmp.lt.s32.totalorder %s19, 0
      %s179 = scalar_select %p178, %s19, 0
      %s180 = sadd.s32 %s179, %s177
      %s181 = smul.addr %s180, 8
      %s182 = scalar_lea.vmem %s3, %s181
      %p183 = scmp.lt.s32.totalorder %s18, 1
      %s184 = scalar_select %p183, %s18, 1
      %p185 = scmp.lt.s32.totalorder %s19, 0
      %s186 = scalar_select %p185, %s19, 0
      %s187 = sadd.s32 %s186, %s184
      %s188 = smul.addr %s187, 4
      %s189 = scalar_lea.vmem %s0, %s188
      %p190 = scmp.lt.s32.totalorder %s18, 1
      %s191 = scalar_select %p190, %s18, 1
      %p192 = scmp.lt.s32.totalorder %s19, 0
      %s193 = scalar_select %p192, %s19, 0
      %s194 = sadd.s32 %s193, %s191
      %s195 = smul.addr %s194, 8
      %s196 = scalar_lea.vmem %s3, %s195
      %v197 = vld [vmem:[%s189] sm:$0xf]
      %v198 = vld [vmem:[%s1] sm:$0xff]
      %v199 = vld [vmem:[%s2] sm:$0xff]
      %201 = vset.pattern.permute.xlu0 0
      %202 = vperm.xlu0 %201, %v199
      %v203 = vpop.permute.xlu0 %202
      %vm205 = vcmask 31744
      %v207 = vsel %vm205, %v198, 0
      %vm209 = vcmask 1043456
      %v211 = vsel %vm209, %v197, 0
      %213 = vmatpush.msra.mxu0 0.0
      %214 = vmatpush.msra.mxu0 0.0
      %215 = vmatpush.msra.mxu0 0.0
      %216 = vmatpush.msra.mxu0 0.0
      %217 = vmatpush.msra.mxu0 0.0
      %218 = vmatpush.msra.mxu0 0.0
      %219 = vmatpush.msra.mxu0 0.0
      %220 = vmatpush.msra.mxu0 0.0
      %221 = vmatpush.msra.mxu0 0.0
      %222 = vmatpush.msra.mxu0 0.0
      %223 = vmatpush.msra.mxu0 0.0
      %224 = vmatpush.msra.mxu0 0.0
      %225 = vmatpush.msra.mxu0 0.0
      %226 = vmatpush.msra.mxu0 0.0
      %227 = vmatpush.msra.mxu0 0.0
      %228 = vmatpush.msra.mxu0 %v211
      %229 = vmatmul.f32.gmra.mxu0 %v207
      %v230 = vpop.f32.mrf.mxu0
      %v231 = vadd.f32 %v203, %v230
      %232 = vdwg.mxu0
      %vm233 = vcmask 523264
      %234 = vst.msk [vmem:[%s196] sm:$0xff] %vm233, %v231
      %p235 = scmp.lt.s32.totalorder %s18, 1
      %s236 = scalar_select %p235, %s18, 1
      %p237 = scmp.lt.s32.totalorder %s19, 0
      %s238 = scalar_select %p237, %s19, 0
      %s239 = sadd.s32 %s238, %s236
      %s240 = smul.addr %s239, 8
      %s241 = scalar_lea.vmem %s3, %s240
      // Predicated region
      $region33: #{downsample_conv.3} parent=31 // pred_check
        %p242 = pneg %p116
      $region34: #{downsample_conv.3} parent=31 // pred_check_branch
        %244 = sbr.rel (%p242) target = $region36
      $region35: #{downsample_conv.3} parent=31 // pred_region
        _
      $region36: #{downsample_conv.3} parent=31 // pred_fallthru
        _
    $region32: #{downsample_conv.3} parent=5 // pred_fallthru
      _
    %p245 = scmp.le.s32.totalorder 2, %s9
    // Predicated region
    $region37: #{downsample_conv.3} parent=5 // pred_check
      %p246 = pneg %p245
    $region38: #{downsample_conv.3} parent=5 // pred_check_branch
      %248 = sbr.rel (%p246) target = $region40
    $region39: #{downsample_conv.3} parent=5 // pred_region
      %s249 = ssub.s32 %s9, 2
      // Predicated region
      $region41: #{downsample_conv.3} parent=39 // pred_check
        %p250 = pneg %p122
      $region42: #{downsample_conv.3} parent=39 // pred_check_branch
        %252 = sbr.rel (%p250) target = $region44
      $region43: #{downsample_conv.3} parent=39 // pred_region
        %p253 = scmp.lt.s32.totalorder %s20, 1
        %s254 = scalar_select %p253, %s20, 1
        %p255 = scmp.lt.s32.totalorder %s21, 0
        %s256 = scalar_select %p255, %s21, 0
        %s257 = sadd.s32 %s256, %s254
        %s258 = smul.addr %s257, 8
        %s259 = scalar_lea.vmem %s3, %s258
      $region44: #{downsample_conv.3} parent=39 // pred_fallthru
        _
    $region40: #{downsample_conv.3} parent=5 // pred_fallthru
      _
  $region6: #{downsample_conv.3} parent=0 // loop_footer
    %s13 = sadd.s32 1, %s9
  $region7: #{downsample_conv.3} parent=0 // loop_footer_branch
    %8 = sbr.rel target = $region3
  $region8: #{downsample_conv.3} parent=0 // loop_exit
    _

</llo_original>
